<compile_context>
chip_gen: v7x
topology: tpu7x:2x2x1
jax: 0.10.0
libtpu: 0.0.40
codegen_flags: <defaults>
</compile_context>

<pallas_src>
import jax
import jax.numpy as jnp
from jax.experimental import pallas as pl
from jax.experimental.pallas import tpu as pltpu


def _cdiv(a, b):
    return -(-a // b)


def _round_up(a, m):
    return _cdiv(a, m) * m


def _dethead_kernel(x_ref, w_ref, b_ref, o_ref):
    # x_ref: (NB, C_in, T_HW)   w_ref: (C_out, C_in) in the MXU compute dtype
    # b_ref: (C_out, 1) f32     o_ref: (NB, C_out, T_HW)
    w = w_ref[...]
    bias = b_ref[...]                      # (C_out, 1) broadcasts over the lane axis
    # NB is a small static constant; a static loop of 2-D MXU matmuls keeps the
    # lowering simple (jnp.dot is not batched on TPU).  DMA dominates; weight
    # re-push per batch element is negligible at this size.
    for i in range(x_ref.shape[0]):
        xi = x_ref[i]
        if xi.dtype != w.dtype:
            xi = xi.astype(w.dtype)        # VPU cast; keeps the MXU in bf16 passes
        y = jnp.dot(w, xi, preferred_element_type=jnp.float32)
        o_ref[i] = (y + bias).astype(o_ref.dtype)


def _select_tiles(N, C_in, C_out, HW, itemsize, lane_tile_max, step_bytes_target):
    """Pick (batch tile nb, lane tile t_hw) for the (batch, HW) grid."""

    def lane_tile(max_lanes):
        if max_lanes >= HW:
            return HW                                   # full extent; Mosaic pads to 128
        return max(128, (max_lanes // 128) * 128)        # lane-dense multiple of 128

    def per_n_bytes(t):                                  # in+out bytes per batch element
        return (C_in + C_out) * _round_up(t, 128) * itemsize

    t_hw = lane_tile(lane_tile_max)

    # Keep one batch element's in+out tile near the per-step byte target so the
    # double-buffered working set stays well under scoped-VMEM defaults.
    while t_hw > 128 and per_n_bytes(t_hw) > step_bytes_target:
        t_hw = lane_tile(_cdiv(t_hw, 2))

    # Pack batch elements per step up to the byte target (cap bounds static
    # unrolling of the per-batch MXU loop).
    nb = max(1, min(N, 32, step_bytes_target // max(per_n_bytes(t_hw), 1)))

    def steps(nb_, t_):
        return _cdiv(N, nb_) * _cdiv(HW, t_)

    # Hard requirement: >= 2 grid steps (v7x dual TensorCore + pipeline overlap).
    while nb > 1 and steps(nb, t_hw) < 2:
        nb = _cdiv(nb, 2)
    while t_hw > 128 and steps(nb, t_hw) < 2:
        t_hw = lane_tile(_cdiv(t_hw, 2))

    # Soft target: >= 4 steps, as long as each step still moves >= 256 KiB.
    while (nb > 1 and steps(nb, t_hw) < 4
           and _cdiv(nb, 2) * per_n_bytes(t_hw) >= (256 << 10)):
        nb = _cdiv(nb, 2)

    return nb, t_hw


def det_head_forward(ftr_nchw, conv2_w, conv2_b, *,
                     mxu_dtype=jnp.bfloat16,
                     lane_tile_max=8192, step_bytes_target=4 << 20):
    """Forward of DetHead (== conv2(ftr): 1x1 conv + bias, see note above).

    ftr_nchw : (N, C_in, H, W)   float dtype (f32 or bf16); output keeps this dtype
    conv2_w  : (C_out, C_in, 1, 1)
    conv2_b  : (C_out,)
    mxu_dtype: dtype fed to the MXU (default bf16; accumulation / bias stay f32)
    """
    N, C_in, H, W = ftr_nchw.shape
    C_out = conv2_w.shape[0]
    HW = H * W
    dtype = ftr_nchw.dtype
    itemsize = jnp.dtype(dtype).itemsize

    nb, t_hw = _select_tiles(N, C_in, C_out, HW, itemsize,
                             lane_tile_max, step_bytes_target)

    x = ftr_nchw.reshape(N, C_in, HW)                    # free reshape (no HBM copy)
    w = conv2_w.reshape(C_out, C_in).astype(mxu_dtype)   # 1x1 conv == channel matmul
    b = conv2_b.reshape(C_out, 1).astype(jnp.float32)    # bias add stays in f32

    grid = (_cdiv(N, nb), _cdiv(HW, t_hw))

    cost = pl.CostEstimate(
        flops=2 * N * C_out * C_in * HW,
        transcendentals=0,
        bytes_accessed=(N * C_in * HW + N * C_out * HW) * itemsize
        + C_out * C_in * jnp.dtype(mxu_dtype).itemsize + C_out * 4,
    )

    out = pl.pallas_call(
        _dethead_kernel,
        out_shape=jax.ShapeDtypeStruct((N, C_out, HW), dtype),
        grid_spec=pltpu.PrefetchScalarGridSpec(
            num_scalar_prefetch=0,
            grid=grid,
            in_specs=[
                pl.BlockSpec((nb, C_in, t_hw), lambda n, h: (n, 0, h)),
                pl.BlockSpec((C_out, C_in), lambda n, h: (0, 0)),
                pl.BlockSpec((C_out, 1), lambda n, h: (0, 0)),
            ],
            out_specs=pl.BlockSpec((nb, C_out, t_hw), lambda n, h: (n, 0, h)),
        ),
        compiler_params=pltpu.CompilerParams(
            dimension_semantics=("parallel", "parallel"),
        ),
        cost_estimate=cost,
    )(x, w, b)

    return out.reshape(N, C_out, H, W)


if __name__ == "__main__":
    # Small cfg consistent with the module: ftrnum channels in, ctgnum+4 out.
    ctgnum, ftrnum = 8, 32
    c_out = ctgnum + 4

    key = jax.random.PRNGKey(0)
    k_x, k_w1, k_b1, k_w2, k_b2, k_x2 = jax.random.split(key, 6)

    # Parameters mirroring __init__ (conv1 / relu are dead code in forward).
    conv1_w = jax.random.normal(k_w1, (ftrnum, ftrnum, 3, 3), dtype=jnp.float32) * 0.02
    conv1_b = jax.random.normal(k_b1, (ftrnum,), dtype=jnp.float32) * 0.02
    conv2_w = jax.random.normal(k_w2, (c_out, ftrnum, 1, 1), dtype=jnp.float32) * 0.05
    conv2_b = jax.random.normal(k_b2, (c_out,), dtype=jnp.float32) * 0.05

    def ref_forward(x, w, bias, compute_dtype=jnp.float32):
        wf = w.reshape(c_out, ftrnum).astype(compute_dtype).astype(jnp.float32)
        xf = x.astype(compute_dtype).astype(jnp.float32)
        y = jnp.einsum("oc,nchw->nohw", wf, xf)
        return y + bias.reshape(1, c_out, 1, 1).astype(jnp.float32)

    # 1) f32 I/O, default bf16-MXU path, lane-aligned spatial size (16x16).
    ftr = jax.random.uniform(k_x, (2, ftrnum, 16, 16), dtype=jnp.float32)
    out = jax.block_until_ready(det_head_forward(ftr, conv2_w, conv2_b))
    assert out.shape == (2, c_out, 16, 16), out.shape
    assert jnp.allclose(out, ref_forward(ftr, conv2_w, conv2_b, jnp.bfloat16),
                        atol=1e-3, rtol=1e-3), "bf16-MXU / f32-I/O mismatch"

    # 2) f32 end-to-end (mxu_dtype=f32), 15x15 spatial with a small lane tile so
    #    the ragged (partial) last lane block is exercised with no host pad/slice.
    ftr_odd = jax.random.uniform(k_x2, (2, ftrnum, 15, 15), dtype=jnp.float32)
    out_odd = jax.block_until_ready(
        det_head_forward(ftr_odd, conv2_w, conv2_b,
                         mxu_dtype=jnp.float32, lane_tile_max=128))
    assert out_odd.shape == (2, c_out, 15, 15), out_odd.shape
    assert jnp.allclose(out_odd, ref_forward(ftr_odd, conv2_w, conv2_b),
                        atol=1e-4, rtol=1e-4), "f32 ragged-HW mismatch"

    # 3) bf16 I/O (halves HBM traffic; accumulation stays f32 in-kernel).
    ftr_bf = ftr.astype(jnp.bfloat16)
    w_bf = conv2_w.astype(jnp.bfloat16)
    out_bf = jax.block_until_ready(det_head_forward(ftr_bf, w_bf, conv2_b))
    assert out_bf.dtype == jnp.bfloat16
    assert jnp.allclose(out_bf.astype(jnp.float32),
                        ref_forward(ftr_bf, w_bf, conv2_b, jnp.bfloat16),
                        atol=3e-2, rtol=3e-2), "bf16 mismatch"

    # 4) Odd batch (N=3) + unaligned HW: exercises the cdiv batch tiling with a
    #    partial last batch block (no divisor-of-N restriction anymore).
    ftr3 = jax.random.uniform(k_x, (3, ftrnum, 15, 15), dtype=jnp.float32)
    out3 = jax.block_until_ready(det_head_forward(ftr3, conv2_w, conv2_b))
    assert out3.shape == (3, c_out, 15, 15), out3.shape
    assert jnp.allclose(out3, ref_forward(ftr3, conv2_w, conv2_b, jnp.bfloat16),
                        atol=1e-3, rtol=1e-3), "partial-batch-block mismatch"

    print("KERNEL_OK")
</pallas_src>

<mosaic_0001>
module attributes {stable_mosaic.version = 11 : i64} {
  func.func @_dethead_kernel(%arg0: i32, %arg1: i32, %arg2: memref<1x32x256xf32, #tpu.memory_space<vmem>>, %arg3: memref<12x32xbf16, #tpu.memory_space<vmem>>, %arg4: memref<12x1xf32, #tpu.memory_space<vmem>>, %arg5: memref<1x12x256xf32, #tpu.memory_space<vmem>>) attributes {dimension_semantics = [#tpu.dimension_semantics<parallel>, #tpu.dimension_semantics<parallel>], iteration_bounds = array<i64: 2, 1>, scalar_prefetch = 0 : i64, scratch_operands = 0 : i64, tpu.core_type = #tpu.core_type<tc>, window_params = [{transform_indices = @transform_0, window_bounds = array<i64: 1, 32, 256>}, {pipeline_mode = #tpu.pipeline_mode<synchronous>, transform_indices = @transform_1, window_bounds = array<i64: 12, 32>}, {pipeline_mode = #tpu.pipeline_mode<synchronous>, transform_indices = @transform_2, window_bounds = array<i64: 12, 1>}, {transform_indices = @transform_3, window_bounds = array<i64: 1, 12, 256>}]} {
    %c0 = arith.constant 0 : index
    %c0_0 = arith.constant 0 : index
    %0 = vector.load %arg3[%c0, %c0_0] : memref<12x32xbf16, #tpu.memory_space<vmem>>, vector<12x32xbf16>
    %c0_1 = arith.constant 0 : index
    %c0_2 = arith.constant 0 : index
    %1 = vector.load %arg4[%c0_1, %c0_2] : memref<12x1xf32, #tpu.memory_space<vmem>>, vector<12x1xf32>
    %c0_3 = arith.constant 0 : index
    %c0_4 = arith.constant 0 : index
    %c0_5 = arith.constant 0 : index
    %2 = vector.load %arg2[%c0_3, %c0_4, %c0_5] : memref<1x32x256xf32, #tpu.memory_space<vmem>>, vector<1x32x256xf32>
    %3 = vector.shape_cast %2 : vector<1x32x256xf32> to vector<32x256xf32>
    %4 = arith.truncf %3 : vector<32x256xf32> to vector<32x256xbf16>
    %cst = arith.constant dense<0.000000e+00> : vector<12x256xf32>
    %5 = tpu.matmul %0, %4, %cst {dimension_numbers = #tpu.dot_dimension_numbers<[1], [0], [0], [1], [0, 0, 1, 1], [], []>} : vector<12x32xbf16>, vector<32x256xbf16>, vector<12x256xf32> -> vector<12x256xf32>
    %6 = vector.broadcast %1 : vector<12x1xf32> to vector<12x256xf32>
    %7 = arith.addf %5, %6 : vector<12x256xf32>
    %c0_6 = arith.constant 0 : index
    %c0_7 = arith.constant 0 : index
    %c0_8 = arith.constant 0 : index
    %8 = vector.load %arg5[%c0_6, %c0_7, %c0_8] : memref<1x12x256xf32, #tpu.memory_space<vmem>>, vector<1x12x256xf32>
    %9 = vector.shape_cast %8 : vector<1x12x256xf32> to vector<12x256xf32>
    %10 = vector.shape_cast %7 : vector<12x256xf32> to vector<1x12x256xf32>
    tpu.vector_store %arg5[%c0_6, %c0_7, %c0_8], %10 {strides = array<i32>} : memref<1x12x256xf32, #tpu.memory_space<vmem>>, vector<1x12x256xf32>,
    return
  }
  func.func @transform_0(%arg0: i32, %arg1: i32) -> (i32, i32, i32) {
    %c0_i32 = arith.constant 0 : i32
    %c0_i32_0 = arith.constant 0 : i32
    return %arg0, %c0_i32, %arg1 : i32, i32, i32
  }
  func.func @transform_1(%arg0: i32, %arg1: i32) -> (i32, i32) {
    %c0_i32 = arith.constant 0 : i32
    %c0_i32_0 = arith.constant 0 : i32
    %c0_i32_1 = arith.constant 0 : i32
    return %c0_i32, %c0_i32_0 : i32, i32
  }
  func.func @transform_2(%arg0: i32, %arg1: i32) -> (i32, i32) {
    %c0_i32 = arith.constant 0 : i32
    %c0_i32_0 = arith.constant 0 : i32
    %c0_i32_1 = arith.constant 0 : i32
    return %c0_i32, %c0_i32_0 : i32, i32
  }
  func.func @transform_3(%arg0: i32, %arg1: i32) -> (i32, i32, i32) {
    %c0_i32 = arith.constant 0 : i32
    %c0_i32_0 = arith.constant 0 : i32
    return %arg0, %c0_i32, %arg1 : i32, i32, i32
  }
}

</mosaic_0001>

<llo_original>
// kernel: tpu_custom_call.1
$region0: #{tpu_custom_call.1}
  #allocation0 [shape = 'u32[]', space=smem, size = 0x4, offset = 0x4, fixed_abs, tag = 'smem constant byte address 0x4 - core index']
  #allocation1 [shape = 'u32[144,128]{1,0:T(1,128)}', space=vmem, size = 0x12000, scoped, tag = 'internal scratch']
  %s0 = inlined_call_operand.hbm [shape: f32[2,32,256], index: 0, kind: input, shape index: {}]
  %s1 = inlined_call_operand.vmem [shape: bf16[12,32], index: 1, kind: input, shape index: {}]
  %s2 = inlined_call_operand.vmem [shape: f32[12,1], index: 2, kind: input, shape index: {}]
  %s3 = inlined_call_operand.vmem [shape: f32[2,12,256], index: 3, kind: output, shape index: {}]
  %s4 = sld [smem:[#allocation0]]
  $region49: #{tpu_custom_call.1} parent=0
    _
  %s6 = ssub.s32 1, %s4
  %s7 = scalar_select 0, %s6, %s4
  $region1: #{tpu_custom_call.1} parent=0
    #allocation2 [shape = 'u8[65536]{0}', space=vmem, size = 0x10000, scoped, tag = 'input window, operand 0']
    #allocation3 [shape = 's32[2]{0}', space=sflag, size = 0x8, scoped, tag = 'scoped memory for tpu_custom_call.1']
    %8 = vsyncpa [#allocation3], 0
    %s9 = scalar_lea.sflag [#allocation3], 1
    %10 = vsyncpa %s9, 0
    loop: start=0, step=1, limit=4
    $region2: #{tpu_custom_call.1} parent=1 // loop_pre_header
      _
    $region3: #{tpu_custom_call.1} parent=1 // loop_header
      %s12 = sphi 0, %s16
      %p13 = scmp.ge.s32.totalorder %s12, 4
      %s19 = sphi 0, %s31
      %s20 = sphi 0, %s27
      %s21 = sphi 0, %s19
      %s22 = sphi 0, %s20
      %s23 = sphi 0, %s21
      %s24 = sphi 0, %s22
      %s36 = sphi 0, %s38
      %s39 = sphi 0, %s36
      %s40 = sphi 0, %s39
      %s56 = sphi 0, %s40
      %s60 = sphi 0, %s60
      %s62 = sphi 0, %s60
      %s63 = sphi 0, %s62
      %s77 = sphi 0, %s63
      %s81 = sphi 0, %s81
      %s83 = sphi 0, %s81
      %s84 = sphi 0, %s83
      %s98 = sphi 0, %s84
      %s106 = sphi 0, %s108
      %s109 = sphi 0, %s106
      %s110 = sphi 0, %s109
      %s126 = sphi 0, %s110
    $region4: #{tpu_custom_call.1} parent=1 // loop_header_branch
      %15 = sbr.rel (%p13) target = $region8
    $region5: #{tpu_custom_call.1} parent=1 // loop_body
      %s17 = ssub.s32 %s12, 1
      %s18 = ssub.s32 %s12, 2
      %s25 = sadd.s32 1, %s20
      %p26 = scmp.ge.s32.totalorder %s25, 1
      %s27 = scalar_select %p26, 0, %s25
      %s28 = sadd.s32 1, %s19
      %s29 = scalar_select %p26, %s28, %s19
      %p30 = scmp.ge.s32.totalorder %s29, 2
      %s31 = scalar_select %p30, 0, %s29
      %s32 = ssub.s32 %s19, %s31
      %s33 = ssub.s32 %s20, %s27
      %s34 = sor.u32 %s32, %s33
      %p35 = scmp.eq.s32.totalorder %s34, 0
      %s37 = sadd.s32 %s36, 1
      %s38 = scalar_select %p35, %s36, %s37
      %p41 = pneg %p35
      %p42 = scmp.eq.s32.totalorder %s12, 1
      %p43 = por %p41, %p42
      %p44 = scmp.ne.s32.totalorder %s36, %s39
      %p45 = scmp.eq.s32.totalorder %s12, 0
      %p46 = por %p44, %p45
      %p47 = scmp.ne.s32.totalorder %s36, %s39
      %p48 = scmp.eq.s32.totalorder %s17, 1
      %p49 = por %p47, %p48
      %p50 = scmp.ne.s32.totalorder %s39, %s40
      %p51 = scmp.eq.s32.totalorder %s17, 0
      %p52 = por %p50, %p51
      %p53 = scmp.ne.s32.totalorder %s39, %s40
      %p54 = scmp.eq.s32.totalorder %s18, 1
      %p55 = por %p53, %p54
      %p57 = scmp.ne.s32.totalorder %s40, %s56
      %p58 = scmp.eq.s32.totalorder %s18, 0
      %p59 = por %p57, %p58
      %s61 = sadd.s32 %s60, 1
      %p64 = scmp.eq.s32.totalorder %s12, 1
      %p65 = scmp.ne.s32.totalorder %s60, %s62
      %p66 = scmp.eq.s32.totalorder %s12, 0
      %p67 = por %p65, %p66
      %p68 = scmp.ne.s32.totalorder %s60, %s62
      %p69 = scmp.eq.s32.totalorder %s17, 1
      %p70 = por %p68, %p69
      %p71 = scmp.ne.s32.totalorder %s62, %s63
      %p72 = scmp.eq.s32.totalorder %s17, 0
      %p73 = por %p71, %p72
      %p74 = scmp.ne.s32.totalorder %s62, %s63
      %p75 = scmp.eq.s32.totalorder %s18, 1
      %p76 = por %p74, %p75
      %p78 = scmp.ne.s32.totalorder %s63, %s77
      %p79 = scmp.eq.s32.totalorder %s18, 0
      %p80 = por %p78, %p79
      %s82 = sadd.s32 %s81, 1
      %p85 = scmp.eq.s32.totalorder %s12, 1
      %p86 = scmp.ne.s32.totalorder %s81, %s83
      %p87 = scmp.eq.s32.totalorder %s12, 0
      %p88 = por %p86, %p87
      %p89 = scmp.ne.s32.totalorder %s81, %s83
      %p90 = scmp.eq.s32.totalorder %s17, 1
      %p91 = por %p89, %p90
      %p92 = scmp.ne.s32.totalorder %s83, %s84
      %p93 = scmp.eq.s32.totalorder %s17, 0
      %p94 = por %p92, %p93
      %p95 = scmp.ne.s32.totalorder %s83, %s84
      %p96 = scmp.eq.s32.totalorder %s18, 1
      %p97 = por %p95, %p96
      %p99 = scmp.ne.s32.totalorder %s84, %s98
      %p100 = scmp.eq.s32.totalorder %s18, 0
      %p101 = por %p99, %p100
      %s102 = ssub.s32 %s19, %s31
      %s103 = ssub.s32 %s20, %s27
      %s104 = sor.u32 %s102, %s103
      %p105 = scmp.eq.s32.totalorder %s104, 0
      %s107 = sadd.s32 %s106, 1
      %s108 = scalar_select %p105, %s106, %s107
      %p111 = pneg %p105
      %p112 = scmp.eq.s32.totalorder %s12, 1
      %p113 = por %p111, %p112
      %p114 = scmp.ne.s32.totalorder %s106, %s109
      %p115 = scmp.eq.s32.totalorder %s12, 0
      %p116 = por %p114, %p115
      %p117 = scmp.ne.s32.totalorder %s106, %s109
      %p118 = scmp.eq.s32.totalorder %s17, 1
      %p119 = por %p117, %p118
      %p120 = scmp.ne.s32.totalorder %s109, %s110
      %p121 = scmp.eq.s32.totalorder %s17, 0
      %p122 = por %p120, %p121
      %p123 = scmp.ne.s32.totalorder %s109, %s110
      %p124 = scmp.eq.s32.totalorder %s18, 1
      %p125 = por %p123, %p124
      %p127 = scmp.ne.s32.totalorder %s110, %s126
      %p128 = scmp.eq.s32.totalorder %s18, 0
      %p129 = por %p127, %p128
      %p130 = scmp.le.s32.totalorder 1, %s12
      %p131 = scmp.lt.s32.totalorder %s12, 3
      %p132 = pnand %p130, %p131
      %p133 = pneg %p132
      // Predicated region
      $region9: #{tpu_custom_call.1} parent=5 // pred_check
        _
      $region10: #{tpu_custom_call.1} parent=5 // pred_check_branch
        %135 = sbr.rel (%p132) target = $region12
      $region11: #{tpu_custom_call.1} parent=5 // pred_region
        %s136 = ssub.s32 %s12, 1
        // Predicated region
        $region13: #{tpu_custom_call.1} parent=11 // pred_check
          %p137 = pneg %p73
        $region14: #{tpu_custom_call.1} parent=11 // pred_check_branch
          %139 = sbr.rel (%p137) target = $region16
        $region15: #{tpu_custom_call.1} parent=11 // pred_region
          _
        $region16: #{tpu_custom_call.1} parent=11 // pred_fallthru
          _
        // Predicated region
        $region17: #{tpu_custom_call.1} parent=11 // pred_check
          %p140 = pneg %p94
        $region18: #{tpu_custom_call.1} parent=11 // pred_check_branch
          %142 = sbr.rel (%p140) target = $region20
        $region19: #{tpu_custom_call.1} parent=11 // pred_region
          _
        $region20: #{tpu_custom_call.1} parent=11 // pred_fallthru
          _
      $region12: #{tpu_custom_call.1} parent=5 // pred_fallthru
        _
      %p143 = scmp.lt.s32.totalorder %s12, 2
      // Predicated region
      $region21: #{tpu_custom_call.1} parent=5 // pred_check
        %p144 = pneg %p143
      $region22: #{tpu_custom_call.1} parent=5 // pred_check_branch
        %146 = sbr.rel (%p144) target = $region24
      $region23: #{tpu_custom_call.1} parent=5 // pred_region
        // Predicated region
        $region25: #{tpu_custom_call.1} parent=23 // pred_check
          %p147 = pneg %p46
        $region26: #{tpu_custom_call.1} parent=23 // pred_check_branch
          %149 = sbr.rel (%p147) target = $region28
        $region27: #{tpu_custom_call.1} parent=23 // pred_region
          %s150 = sand.u32 %s36, 1
          %s151 = scalar_lea.sflag [#allocation3], %s150
          %s152 = sand.u32 %s36, 1
          %s153 = smul.addr %s152, 64
          %s154 = scalar_lea.vmem [#allocation2], %s153
          %s155 = smul.u32 2, %s20
          %s157 = ssub.s32 1024, 1024
          %158 = vsyncadd %s151, %s157
          %s159 = smul.addr %s19, 8
          %s160 = sadd.s32 %s155, %s159
          %s161 = smul.addr %s160, 128
          %s162 = scalar_lea.hbm %s0, %s161
          %s163 = sshll.u32 %s154, 4
          %s164 = int_to_ptr.vmem [resolvable:$true] %s163
          %169 = dma.hbm_to_vmem [thread:$0]  %s162, 1024, %s164, %s151, 256, 256, 16
        $region28: #{tpu_custom_call.1} parent=23 // pred_fallthru
          _
      $region24: #{tpu_custom_call.1} parent=5 // pred_fallthru
        _
      %p170 = scmp.le.s32.totalorder 1, %s12
      %p171 = scmp.lt.s32.totalorder %s12, 3
      %p172 = pnand %p170, %p171
      %p173 = pneg %p172
      // Predicated region
      $region29: #{tpu_custom_call.1} parent=5 // pred_check
        _
      $region30: #{tpu_custom_call.1} parent=5 // pred_check_branch
        %175 = sbr.rel (%p172) target = $region32
      $region31: #{tpu_custom_call.1} parent=5 // pred_region
        %s176 = ssub.s32 %s12, 1
        %s177 = sand.u32 %s39, 1
        %s178 = scalar_lea.sflag [#allocation3], %s177
        %s179 = sand.u32 %s39, 1
        %s180 = smul.addr %s179, 64
        %s181 = scalar_lea.vmem [#allocation2], %s180
        // Predicated region
        $region33: #{tpu_custom_call.1} parent=31 // pred_check
          %p182 = pneg %p52
        $region34: #{tpu_custom_call.1} parent=31 // pred_check_branch
          %184 = sbr.rel (%p182) target = $region36
        $region35: #{tpu_custom_call.1} parent=31 // pred_region
          %185 = dma.done %s178, 1024
        $region36: #{tpu_custom_call.1} parent=31 // pred_fallthru
          _
        %s186 = sand.u32 %s39, 1
        %s187 = scalar_lea.sflag [#allocation3], %s186
        %s188 = sand.u32 %s39, 1
        %s189 = smul.addr %s188, 64
        %s190 = scalar_lea.vmem [#allocation2], %s189
        %p191 = pneg %p52
        %p192 = pneg %p49
        %p193 = pneg %p73
        %p194 = pneg %p70
        %p195 = pneg %p94
        %p196 = pneg %p91
        %p197 = pneg %p122
        %p198 = pneg %p119
        %s199 = smul.u32 2, %s22
        %p200 = scmp.lt.s32.totalorder %s21, 1
        %s201 = scalar_select %p200, %s21, 1
        %p202 = scmp.lt.s32.totalorder %s199, 1
        %s203 = scalar_select %p202, %s199, 1
        %s204 = smul.addr %s201, 4
        %s205 = sadd.s32 %s203, %s204
        %s206 = smul.addr %s205, 8
        %s207 = scalar_lea.vmem %s3, %s206
        %s208 = smul.u32 2, %s22
        %s209 = smul.u32 2, %s22
        %p210 = scmp.lt.s32.totalorder %s21, 1
        %s211 = scalar_select %p210, %s21, 1
        %p212 = scmp.lt.s32.totalorder %s209, 1
        %s213 = scalar_select %p212, %s209, 1
        %s214 = smul.addr %s211, 4
        %s215 = sadd.s32 %s213, %s214
        %s216 = smul.addr %s215, 8
        %s217 = scalar_lea.vmem %s3, %s216
        %s218 = smul.u32 2, %s22
        %v220 = vld [vmem:[%s1] sm:$0xf]
        %v221 = vld [vmem:[%s1 + $0x4] sm:$0x3]
        %v222 = vld [vmem:[%s2] sm:$0xff]
        %v223 = vld [vmem:[%s2 + $0x8] sm:$0xf]
        %v224 = vld [vmem:[%s181] sm:$0xff]
        %v225 = vld [vmem:[%s181 + $0x8] sm:$0xff]
        %v226 = vld [vmem:[%s181 + $0x10] sm:$0xff]
        %v227 = vld [vmem:[%s181 + $0x18] sm:$0xff]
        %v228 = vld [vmem:[%s181 + $0x20] sm:$0xff]
        %v229 = vld [vmem:[%s181 + $0x28] sm:$0xff]
        %v230 = vld [vmem:[%s181 + $0x30] sm:$0xff]
        %v231 = vld [vmem:[%s181 + $0x38] sm:$0xff]
        %v232 = vpack.c.bf16 %v226, %v224
        %v233 = vpack.c.bf16 %v227, %v225
        %v234 = vpack.c.bf16 %v230, %v228
        %v235 = vpack.c.bf16 %v231, %v229
        %237 = vset.pattern.permute.xlu0 0
        %238 = vperm.xlu0 %237, %v222
        %v239 = vpop.permute.xlu0 %238
        %242 = vset.pattern.permute.xlu0 0
        %243 = vperm.xlu0 %242, %v223
        %v244 = vpop.permute.xlu0 %243
        %v248 = vunpack.c.l.b16 %v220
        %v249 = vunpack.c.l.b16 %v221
        %v250 = vpack.c.b16 %v249, %v248
        %vm251 = vcmask 261120
        %v253 = vsel %vm251, %v250, 0
        %255 = vmatprep.subr.bf16.mxu0 %v233
        %256 = vmatpush1.bf16.msra.mxu0 %v232
        %257 = vmatprep.subr.bf16.mxu0 %v235
        %258 = vmatpush1.bf16.msra.mxu0 %v234
        %259 = vmatprep.subr.bf16.mxu0 0
        %260 = vmatpush1.bf16.msra.mxu0 0
        %261 = vmatprep.subr.bf16.mxu0 0
        %262 = vmatpush1.bf16.msra.mxu0 0
        %263 = vmatprep.subr.bf16.mxu0 0
        %264 = vmatpush1.bf16.msra.mxu0 0
        %265 = vmatprep.subr.bf16.mxu0 0
        %266 = vmatpush1.bf16.msra.mxu0 0
        %267 = vmatprep.subr.bf16.mxu0 0
        %268 = vmatpush1.bf16.msra.mxu0 0
        %269 = vmatprep.subr.bf16.mxu0 0
        %270 = vmatpush1.bf16.msra.mxu0 0
        %271 = vmatprep.subr.bf16.mxu0 0
        %272 = vmatpush1.bf16.msra.mxu0 0
        %273 = vmatprep.subr.bf16.mxu0 0
        %274 = vmatpush1.bf16.msra.mxu0 0
        %275 = vmatprep.subr.bf16.mxu0 0
        %276 = vmatpush1.bf16.msra.mxu0 0
        %277 = vmatprep.subr.bf16.mxu0 0
        %278 = vmatpush1.bf16.msra.mxu0 0
        %279 = vmatprep.subr.bf16.mxu0 0
        %280 = vmatpush1.bf16.msra.mxu0 0
        %281 = vmatprep.subr.bf16.mxu0 0
        %282 = vmatpush1.bf16.msra.mxu0 0
        %283 = vmatprep.subr.bf16.mxu0 0
        %284 = vmatpush1.bf16.msra.mxu0 0
        %285 = vmatprep.subr.bf16.mxu0 0
        %286 = vmatpush1.bf16.msra.mxu0 0
        %287 = vmatprep.mubr.bf16.mxu0 0
        %288 = vmatmul.mubr.bf16.gmra.mrb[0].mxu0 %v253
        %v289 = vpop.f32.mrb[0].mxu0
        %v290 = vadd.f32 %v239, %v289
        %v291 = vpop.f32.mrb[0].mxu0
        %v292 = vadd.f32 %v239, %v291
        %v293 = vpop.f32.mrb[0].mxu0
        %v294 = vadd.f32 %v244, %v293
        %v295 = vpop.f32.mrb[0].mxu0
        %v296 = vadd.f32 %v244, %v295
        %297 = vdwg.mxu0
        %298 = vst [vmem:[%s217] sm:$0xff] %v290
        %299 = vst [vmem:[%s217 + $0x8] sm:$0xff] %v292
        %300 = vst [vmem:[%s217 + $0x10] sm:$0xf] %v294
        %301 = vst [vmem:[%s217 + $0x18] sm:$0xf] %v296
        %s302 = smul.u32 2, %s22
        %p303 = scmp.lt.s32.totalorder %s21, 1
        %s304 = scalar_select %p303, %s21, 1
        %p305 = scmp.lt.s32.totalorder %s302, 1
        %s306 = scalar_select %p305, %s302, 1
        %s307 = smul.addr %s304, 4
        %s308 = sadd.s32 %s306, %s307
        %s309 = smul.addr %s308, 8
        %s310 = scalar_lea.vmem %s3, %s309
        // Predicated region
        $region37: #{tpu_custom_call.1} parent=31 // pred_check
          %p311 = pneg %p119
        $region38: #{tpu_custom_call.1} parent=31 // pred_check_branch
          %313 = sbr.rel (%p311) target = $region40
        $region39: #{tpu_custom_call.1} parent=31 // pred_region
          %s314 = smul.u32 2, %s22
        $region40: #{tpu_custom_call.1} parent=31 // pred_fallthru
          _
      $region32: #{tpu_custom_call.1} parent=5 // pred_fallthru
        _
      %p315 = scmp.le.s32.totalorder 2, %s12
      // Predicated region
      $region41: #{tpu_custom_call.1} parent=5 // pred_check
        %p316 = pneg %p315
      $region42: #{tpu_custom_call.1} parent=5 // pred_check_branch
        %318 = sbr.rel (%p316) target = $region44
      $region43: #{tpu_custom_call.1} parent=5 // pred_region
        %s319 = ssub.s32 %s12, 2
        // Predicated region
        $region45: #{tpu_custom_call.1} parent=43 // pred_check
          %p320 = pneg %p125
        $region46: #{tpu_custom_call.1} parent=43 // pred_check_branch
          %322 = sbr.rel (%p320) target = $region48
        $region47: #{tpu_custom_call.1} parent=43 // pred_region
          %s323 = smul.u32 2, %s24
          %p324 = scmp.lt.s32.totalorder %s23, 1
          %s325 = scalar_select %p324, %s23, 1
          %p326 = scmp.lt.s32.totalorder %s323, 1
          %s327 = scalar_select %p326, %s323, 1
          %s328 = smul.addr %s325, 4
          %s329 = sadd.s32 %s327, %s328
          %s330 = smul.addr %s329, 8
          %s331 = scalar_lea.vmem %s3, %s330
        $region48: #{tpu_custom_call.1} parent=43 // pred_fallthru
          _
      $region44: #{tpu_custom_call.1} parent=5 // pred_fallthru
        _
    $region6: #{tpu_custom_call.1} parent=1 // loop_footer
      %s16 = sadd.s32 1, %s12
    $region7: #{tpu_custom_call.1} parent=1 // loop_footer_branch
      %11 = sbr.rel target = $region3
    $region8: #{tpu_custom_call.1} parent=1 // loop_exit
      _
    %332 = vsyncpa [#allocation3], 1
    %s333 = scalar_lea.sflag [#allocation3], 1
    %334 = vsyncpa %s333, 1

</llo_original>
